<compile_context>
chip_gen: v5e
topology: v5e:2x2
jax: 0.10.0
libtpu: 0.0.40
codegen_flags: <defaults>
</compile_context>

<pallas_src>
import functools
from typing import NamedTuple, List

import jax
import jax.numpy as jnp
from jax.experimental import pallas as pl
from jax.experimental.pallas import tpu as pltpu


# ----------------------------------------------------------------------------
# Graph containers (mirror the PyTorch namedtuples)
# ----------------------------------------------------------------------------
class EdgeSet(NamedTuple):
    name: str
    features: jnp.ndarray
    senders: jnp.ndarray
    receivers: jnp.ndarray


class MultiGraph(NamedTuple):
    node_features: List[jnp.ndarray]
    edge_sets: List[EdgeSet]


def _round_up(x, m):
    return ((x + m - 1) // m) * m


def _pad2(a, rows, cols):
    return jnp.pad(a, ((0, rows - a.shape[0]), (0, cols - a.shape[1])))


# ----------------------------------------------------------------------------
# Fused multi-model MLP (+ LayerNorm) Pallas kernel
# ----------------------------------------------------------------------------
def _fused_mlp_ln_kernel(model_id_ref, x_ref, w1_ref, w2_ref, w3_ref, c_ref,
                         o_ref, *, out_dim):
    # Per-tile model id from the scalar-prefetched SMEM array; weights are
    # VMEM-resident for the whole grid and indexed dynamically here.
    mid = model_id_ref[pl.program_id(0)]

    x = x_ref[...]                       # (tile_rows, f_in_pad)
    w1 = w1_ref[mid]                     # (f_in_pad, H_pad)
    w2 = w2_ref[mid]                     # (H_pad, H_pad)
    w3 = w3_ref[mid]                     # (H_pad, H_pad)
    c = c_ref[mid]                       # (8, H_pad) f32: b1,b2,b3,gamma,beta

    b1, b2, b3 = c[0:1, :], c[1:2, :], c[2:3, :]
    gamma, beta = c[3:4, :], c[4:5, :]

    # MXU matmuls in the weight dtype (bf16 by default), f32 accumulation.
    h = jnp.dot(x.astype(w1.dtype), w1,
                preferred_element_type=jnp.float32) + b1
    h = jnp.maximum(h, 0.0)
    h = jnp.dot(h.astype(w2.dtype), w2,
                preferred_element_type=jnp.float32) + b2
    h = jnp.maximum(h, 0.0)
    y = jnp.dot(h.astype(w3.dtype), w3,
                preferred_element_type=jnp.float32) + b3

    # LayerNorm over the TRUE feature count (padded columns of y are exactly
    # zero because the padded weight columns / bias entries are zero).
    out_pad = y.shape[-1]
    inv_d = 1.0 / float(out_dim)
    mean = jnp.sum(y, axis=-1, keepdims=True) * inv_d
    centered = y - mean
    if out_pad != out_dim:
        col = jax.lax.broadcasted_iota(jnp.int32, (1, out_pad), 1)
        centered = centered * (col < out_dim).astype(jnp.float32)
    var = jnp.sum(centered * centered, axis=-1, keepdims=True) * inv_d
    y_norm = centered * jax.lax.rsqrt(var + 1e-5)
    o_ref[...] = (y_norm * gamma + beta).astype(o_ref.dtype)


@functools.partial(
    jax.jit,
    static_argnames=("model_idx", "tile_rows", "latent_size", "f_in_pad",
                     "latent_pad", "out_dtype"))
def _encode_segments(features, w1s, w2s, w3s, consts, *, model_idx, tile_rows,
                     latent_size, f_in_pad, latent_pad, out_dtype):
    """Run all MLPs in ONE fused pallas_call.

    features : tuple of [n_i, f_i] arrays (nodes / hyper-nodes / edge sets)
    model_idx: static tuple of model indices (one per segment)
    Returns a tuple of [n_i, latent_size] outputs (one per segment).
    """
    act_dtype = w1s.dtype               # stage activations in the MXU dtype
    n_models = w1s.shape[0]

    segs = []
    model_id_list = []
    row_info = []                       # (offset, n) per segment, or None
    offset = 0
    for feat, mid in zip(features, model_idx):
        n, f = feat.shape
        if n == 0:                      # skip empty segments entirely
            row_info.append(None)
            continue
        n_pad = _round_up(n, tile_rows)
        x = jnp.pad(feat.astype(act_dtype),
                    ((0, n_pad - n), (0, f_in_pad - f)))
        segs.append(x)
        model_id_list += [int(mid)] * (n_pad // tile_rows)
        row_info.append((offset, n))
        offset += n_pad

    if not segs:
        return tuple(jnp.zeros((0, latent_size), out_dtype) for _ in features)

    x_all = jnp.concatenate(segs, axis=0)
    model_ids = jnp.asarray(model_id_list, dtype=jnp.int32)
    num_tiles = x_all.shape[0] // tile_rows

    kernel = functools.partial(_fused_mlp_ln_kernel, out_dim=latent_size)

    out = pl.pallas_call(
        kernel,
        out_shape=jax.ShapeDtypeStruct((x_all.shape[0], latent_pad), out_dtype),
        grid_spec=pltpu.PrefetchScalarGridSpec(
            num_scalar_prefetch=1,
            grid=(num_tiles,),
            in_specs=[
                # activations: one row tile per grid step (narrow last dim ==
                # full array dim, so the <128 width is legal)
                pl.BlockSpec((tile_rows, f_in_pad), lambda i, mid: (i, 0)),
                # full weight stacks: constant index_map -> DMA'd once,
                # VMEM-resident for the whole grid
                pl.BlockSpec((n_models, f_in_pad, latent_pad),
                             lambda i, mid: (0, 0, 0)),
                pl.BlockSpec((n_models, latent_pad, latent_pad),
                             lambda i, mid: (0, 0, 0)),
                pl.BlockSpec((n_models, latent_pad, latent_pad),
                             lambda i, mid: (0, 0, 0)),
                # packed b1/b2/b3/gamma/beta slab (f32), also resident
                pl.BlockSpec((n_models, 8, latent_pad),
                             lambda i, mid: (0, 0, 0)),
            ],
            out_specs=pl.BlockSpec((tile_rows, latent_pad),
                                   lambda i, mid: (i, 0)),
        ),
        compiler_params=pltpu.CompilerParams(
            dimension_semantics=("parallel",),
            vmem_limit_bytes=32 * 1024 * 1024,
        ),
    )(model_ids, x_all, w1s, w2s, w3s, consts)

    results = []
    for info in row_info:
        if info is None:
            results.append(jnp.zeros((0, latent_size), out_dtype))
        else:
            start, n = info
            results.append(out[start:start + n, :latent_size])
    return tuple(results)


# ----------------------------------------------------------------------------
# Parameter construction (deterministic, in-script)
# ----------------------------------------------------------------------------
def make_mlp_params(key, in_dim, latent_size):
    """Params for Linear -> ReLU -> Linear -> ReLU -> Linear -> LayerNorm."""
    k1, k2, k3 = jax.random.split(key, 3)

    def lin(k, fan_in, fan_out):
        scale = 1.0 / jnp.sqrt(jnp.float32(fan_in))
        w = jax.random.uniform(k, (fan_in, fan_out), jnp.float32, -scale, scale)
        b = jnp.zeros((1, fan_out), jnp.float32)
        return w, b

    w1, b1 = lin(k1, in_dim, latent_size)
    w2, b2 = lin(k2, latent_size, latent_size)
    w3, b3 = lin(k3, latent_size, latent_size)
    gamma = jnp.ones((1, latent_size), jnp.float32)
    beta = jnp.zeros((1, latent_size), jnp.float32)
    return (w1, b1, w2, b2, w3, b3, gamma, beta)


# ----------------------------------------------------------------------------
# Encoder
# ----------------------------------------------------------------------------
class Encoder:
    # model indices into the stacked weight arrays
    _NODE, _HYPER, _MESH, _WORLD, _INTER, _INTRA = range(6)
    _EDGE_MODEL = {'mesh_edges': _MESH,
                   'inter_cluster': _INTER,
                   'intra_cluster': _INTRA}   # everything else -> world_edge

    def __init__(self, key, latent_size, node_in_dim, edge_in_dim, *,
                 tile_rows=256, weight_dtype=jnp.bfloat16,
                 out_dtype=jnp.float32):
        ks = jax.random.split(key, 6)
        self._latent_size = latent_size
        # multiple of 16 keeps bf16 sublane packing clean; size it to the
        # graph (small graphs -> small tiles, 256-1024 for production graphs).
        self._tile_rows = _round_up(max(tile_rows, 16), 16)
        self._out_dtype = out_dtype
        in_dims = [node_in_dim, node_in_dim, edge_in_dim, edge_in_dim,
                   edge_in_dim, edge_in_dim]
        self.params = [make_mlp_params(k, d, latent_size)
                       for k, d in zip(ks, in_dims)]
        (self.node_model, self.hyper_node_model, self.mesh_edge_model,
         self.world_edge_model, self.inter_cluster_model,
         self.intra_cluster_model) = self.params

        # Narrow contraction dim (multiple of 16, NOT 128) and lane-dense
        # latent (multiple of 128), padded once at init.
        self._f_in_pad = _round_up(max(in_dims), 16)
        self._latent_pad = _round_up(latent_size, 128)
        self._weight_dtype = weight_dtype
        self._stack_params(weight_dtype)

    def _stack_params(self, weight_dtype):
        f_in_pad, h_pad = self._f_in_pad, self._latent_pad
        w1s, w2s, w3s, consts = [], [], [], []
        for (w1, b1, w2, b2, w3, b3, gamma, beta) in self.params:
            w1s.append(_pad2(w1, f_in_pad, h_pad))
            w2s.append(_pad2(w2, h_pad, h_pad))
            w3s.append(_pad2(w3, h_pad, h_pad))
            consts.append(jnp.concatenate([
                _pad2(b1, 1, h_pad), _pad2(b2, 1, h_pad), _pad2(b3, 1, h_pad),
                _pad2(gamma, 1, h_pad), _pad2(beta, 1, h_pad),
                jnp.zeros((3, h_pad), jnp.float32)], axis=0))
        # Weights bf16 (MXU-friendly); biases/LayerNorm constants stay f32.
        self._w1s = jnp.stack(w1s).astype(weight_dtype)
        self._w2s = jnp.stack(w2s).astype(weight_dtype)
        self._w3s = jnp.stack(w3s).astype(weight_dtype)
        self._consts = jnp.stack(consts)

    def __call__(self, graph: MultiGraph) -> MultiGraph:
        feats = [graph.node_features[0]]
        mids = [self._NODE]
        # PyTorch uses try/except IndexError — emulate with a length check.
        if len(graph.node_features) > 1:
            feats.append(graph.node_features[1])
            mids.append(self._HYPER)
        for es in graph.edge_sets:
            feats.append(es.features)
            mids.append(self._EDGE_MODEL.get(es.name, self._WORLD))

        # NOTE(v7x): for best 2-TensorCore balance, order segments so the two
        # halves of the grid have comparable row counts (no-op on v5e/v6e).
        outs = _encode_segments(
            tuple(feats), self._w1s, self._w2s, self._w3s, self._consts,
            model_idx=tuple(mids), tile_rows=self._tile_rows,
            latent_size=self._latent_size, f_in_pad=self._f_in_pad,
            latent_pad=self._latent_pad, out_dtype=self._out_dtype)

        n_node_segs = 2 if len(graph.node_features) > 1 else 1
        node_latents = list(outs[:n_node_segs])
        new_edge_sets = [es._replace(features=o)
                         for es, o in zip(graph.edge_sets, outs[n_node_segs:])]
        return MultiGraph(node_latents, new_edge_sets)


# ----------------------------------------------------------------------------
# Pure-JAX reference for sanity checking (same mixed-precision recipe:
# bf16 operands, f32 accumulation, f32 LayerNorm)
# ----------------------------------------------------------------------------
def mlp_forward_ref(x, params, compute_dtype=jnp.float32):
    w1, b1, w2, b2, w3, b3, gamma, beta = params

    def dot(a, w):
        return jnp.dot(a.astype(compute_dtype), w.astype(compute_dtype),
                       preferred_element_type=jnp.float32)

    h = jnp.maximum(dot(x, w1) + b1, 0.0)
    h = jnp.maximum(dot(h, w2) + b2, 0.0)
    y = dot(h, w3) + b3
    mean = jnp.mean(y, axis=-1, keepdims=True)
    var = jnp.mean((y - mean) ** 2, axis=-1, keepdims=True)
    return (y - mean) * jax.lax.rsqrt(var + 1e-5) * gamma + beta


if __name__ == "__main__":
    key = jax.random.PRNGKey(0)
    k_enc, k_n0, k_n1, k_e0, k_e1, k_e2, k_e3 = jax.random.split(key, 7)

    latent_size = 128          # lane-dense output (multiple of 128)
    node_in_dim = 12
    edge_in_dim = 8

    n_nodes, n_hyper = 16, 8
    n_mesh, n_world, n_inter, n_intra = 24, 10, 16, 16

    node_feats = [
        jax.random.normal(k_n0, (n_nodes, node_in_dim), jnp.float32),
        jax.random.normal(k_n1, (n_hyper, node_in_dim), jnp.float32),
    ]

    def mk_edge(k, name, n_edges):
        return EdgeSet(
            name=name,
            features=jax.random.normal(k, (n_edges, edge_in_dim), jnp.float32),
            senders=jnp.zeros((n_edges,), jnp.int32),
            receivers=jnp.zeros((n_edges,), jnp.int32),
        )

    edge_sets = [
        mk_edge(k_e0, 'mesh_edges', n_mesh),
        mk_edge(k_e1, 'world_edges', n_world),
        mk_edge(k_e2, 'inter_cluster', n_inter),
        mk_edge(k_e3, 'intra_cluster', n_intra),
    ]

    graph = MultiGraph(node_feats, edge_sets)

    # tile_rows=32 matches the tiny demo segments (8-24 rows); use 256-1024
    # for production-scale graphs.
    encoder = Encoder(k_enc, latent_size, node_in_dim, edge_in_dim,
                      tile_rows=32, weight_dtype=jnp.bfloat16)
    out = encoder(graph)

    # Block on all outputs.
    for nl in out.node_features:
        jax.block_until_ready(nl)
    for es in out.edge_sets:
        jax.block_until_ready(es.features)

    # Sanity check against a pure-JAX reference using the same bf16-operand /
    # f32-accumulation recipe as the kernel.
    atol = rtol = 2e-3
    cd = jnp.bfloat16
    ref0 = mlp_forward_ref(node_feats[0], encoder.node_model, cd)
    assert jnp.allclose(out.node_features[0], ref0, atol=atol, rtol=rtol)
    ref1 = mlp_forward_ref(node_feats[1], encoder.hyper_node_model, cd)
    assert jnp.allclose(out.node_features[1], ref1, atol=atol, rtol=rtol)
    ref_mesh = mlp_forward_ref(edge_sets[0].features, encoder.mesh_edge_model, cd)
    assert jnp.allclose(out.edge_sets[0].features, ref_mesh, atol=atol, rtol=rtol)
    ref_world = mlp_forward_ref(edge_sets[1].features, encoder.world_edge_model, cd)
    assert jnp.allclose(out.edge_sets[1].features, ref_world, atol=atol, rtol=rtol)
    ref_inter = mlp_forward_ref(edge_sets[2].features, encoder.inter_cluster_model, cd)
    assert jnp.allclose(out.edge_sets[2].features, ref_inter, atol=atol, rtol=rtol)
    ref_intra = mlp_forward_ref(edge_sets[3].features, encoder.intra_cluster_model, cd)
    assert jnp.allclose(out.edge_sets[3].features, ref_intra, atol=atol, rtol=rtol)

    assert out.node_features[0].shape == (n_nodes, latent_size)
    assert out.node_features[1].shape == (n_hyper, latent_size)
    assert out.edge_sets[1].features.shape == (n_world, latent_size)

    print("KERNEL_OK")
</pallas_src>

<mosaic_0001>
module attributes {stable_mosaic.version = 11 : i64} {
  func.func @_fused_mlp_ln_kernel(%arg0: i32, %arg1: memref<6xi32, #tpu.memory_space<smem>>, %arg2: memref<32x16xbf16, #tpu.memory_space<vmem>>, %arg3: memref<6x16x128xbf16, #tpu.memory_space<vmem>>, %arg4: memref<6x128x128xbf16, #tpu.memory_space<vmem>>, %arg5: memref<6x128x128xbf16, #tpu.memory_space<vmem>>, %arg6: memref<6x8x128xf32, #tpu.memory_space<vmem>>, %arg7: memref<32x128xf32, #tpu.memory_space<vmem>>) attributes {dimension_semantics = [#tpu.dimension_semantics<parallel>], iteration_bounds = array<i64: 6>, scalar_prefetch = 1 : i64, scratch_operands = 0 : i64, tpu.core_type = #tpu.core_type<tc>, window_params = [{transform_indices = @transform_0, window_bounds = array<i64: 32, 16>}, {pipeline_mode = #tpu.pipeline_mode<synchronous>, transform_indices = @transform_1, window_bounds = array<i64: 6, 16, 128>}, {pipeline_mode = #tpu.pipeline_mode<synchronous>, transform_indices = @transform_2, window_bounds = array<i64: 6, 128, 128>}, {pipeline_mode = #tpu.pipeline_mode<synchronous>, transform_indices = @transform_3, window_bounds = array<i64: 6, 128, 128>}, {pipeline_mode = #tpu.pipeline_mode<synchronous>, transform_indices = @transform_4, window_bounds = array<i64: 6, 8, 128>}, {transform_indices = @transform_5, window_bounds = array<i64: 32, 128>}]} {
    %0 = arith.index_cast %arg0 : i32 to index
    %1 = memref.load %arg1[%0] : memref<6xi32, #tpu.memory_space<smem>>
    %c0 = arith.constant 0 : index
    %c0_0 = arith.constant 0 : index
    %2 = vector.load %arg2[%c0, %c0_0] : memref<32x16xbf16, #tpu.memory_space<vmem>>, vector<32x16xbf16>
    %3 = arith.index_cast %1 : i32 to index
    %c0_1 = arith.constant 0 : index
    %c0_2 = arith.constant 0 : index
    %4 = vector.load %arg3[%3, %c0_1, %c0_2] : memref<6x16x128xbf16, #tpu.memory_space<vmem>>, vector<1x16x128xbf16>
    %5 = vector.shape_cast %4 : vector<1x16x128xbf16> to vector<16x128xbf16>
    %6 = arith.index_cast %1 : i32 to index
    %c0_3 = arith.constant 0 : index
    %c0_4 = arith.constant 0 : index
    %7 = vector.load %arg4[%6, %c0_3, %c0_4] : memref<6x128x128xbf16, #tpu.memory_space<vmem>>, vector<1x128x128xbf16>
    %8 = vector.shape_cast %7 : vector<1x128x128xbf16> to vector<128x128xbf16>
    %9 = arith.index_cast %1 : i32 to index
    %c0_5 = arith.constant 0 : index
    %c0_6 = arith.constant 0 : index
    %10 = vector.load %arg5[%9, %c0_5, %c0_6] : memref<6x128x128xbf16, #tpu.memory_space<vmem>>, vector<1x128x128xbf16>
    %11 = vector.shape_cast %10 : vector<1x128x128xbf16> to vector<128x128xbf16>
    %12 = arith.index_cast %1 : i32 to index
    %c0_7 = arith.constant 0 : index
    %c0_8 = arith.constant 0 : index
    %13 = vector.load %arg6[%12, %c0_7, %c0_8] : memref<6x8x128xf32, #tpu.memory_space<vmem>>, vector<1x8x128xf32>
    %14 = vector.shape_cast %13 : vector<1x8x128xf32> to vector<8x128xf32>
    %15 = vector.extract_strided_slice %14 {offsets = [0, 0], sizes = [1, 128], strides = [1, 1]} : vector<8x128xf32> to vector<1x128xf32>
    %16 = vector.extract_strided_slice %14 {offsets = [1, 0], sizes = [1, 128], strides = [1, 1]} : vector<8x128xf32> to vector<1x128xf32>
    %17 = vector.extract_strided_slice %14 {offsets = [2, 0], sizes = [1, 128], strides = [1, 1]} : vector<8x128xf32> to vector<1x128xf32>
    %18 = vector.extract_strided_slice %14 {offsets = [3, 0], sizes = [1, 128], strides = [1, 1]} : vector<8x128xf32> to vector<1x128xf32>
    %19 = vector.extract_strided_slice %14 {offsets = [4, 0], sizes = [1, 128], strides = [1, 1]} : vector<8x128xf32> to vector<1x128xf32>
    %cst = arith.constant dense<0.000000e+00> : vector<32x128xf32>
    %20 = tpu.matmul %2, %5, %cst {dimension_numbers = #tpu.dot_dimension_numbers<[1], [0], [0], [1], [0, 0, 1, 1], [], []>} : vector<32x16xbf16>, vector<16x128xbf16>, vector<32x128xf32> -> vector<32x128xf32>
    %21 = vector.broadcast %15 : vector<1x128xf32> to vector<32x128xf32>
    %22 = arith.addf %20, %21 : vector<32x128xf32>
    %cst_9 = arith.constant 0.000000e+00 : f32
    %23 = vector.broadcast %cst_9 : f32 to vector<32x128xf32>
    %24 = arith.maximumf %22, %23 : vector<32x128xf32>
    %25 = arith.truncf %24 : vector<32x128xf32> to vector<32x128xbf16>
    %cst_10 = arith.constant dense<0.000000e+00> : vector<32x128xf32>
    %26 = tpu.matmul %25, %8, %cst_10 {dimension_numbers = #tpu.dot_dimension_numbers<[1], [0], [0], [1], [0, 0, 1, 1], [], []>} : vector<32x128xbf16>, vector<128x128xbf16>, vector<32x128xf32> -> vector<32x128xf32>
    %27 = vector.broadcast %16 : vector<1x128xf32> to vector<32x128xf32>
    %28 = arith.addf %26, %27 : vector<32x128xf32>
    %cst_11 = arith.constant 0.000000e+00 : f32
    %29 = vector.broadcast %cst_11 : f32 to vector<32x128xf32>
    %30 = arith.maximumf %28, %29 : vector<32x128xf32>
    %31 = arith.truncf %30 : vector<32x128xf32> to vector<32x128xbf16>
    %cst_12 = arith.constant dense<0.000000e+00> : vector<32x128xf32>
    %32 = tpu.matmul %31, %11, %cst_12 {dimension_numbers = #tpu.dot_dimension_numbers<[1], [0], [0], [1], [0, 0, 1, 1], [], []>} : vector<32x128xbf16>, vector<128x128xbf16>, vector<32x128xf32> -> vector<32x128xf32>
    %33 = vector.broadcast %17 : vector<1x128xf32> to vector<32x128xf32>
    %34 = arith.addf %32, %33 : vector<32x128xf32>
    %cst_13 = arith.constant dense<0.000000e+00> : vector<32xf32>
    %35 = vector.multi_reduction <add>, %34, %cst_13 [1] : vector<32x128xf32> to vector<32xf32>
    %36 = vector.shape_cast %35 : vector<32xf32> to vector<32x1xf32>
    %cst_14 = arith.constant 7.812500e-03 : f32
    %37 = vector.broadcast %cst_14 : f32 to vector<32x1xf32>
    %38 = arith.mulf %36, %37 : vector<32x1xf32>
    %39 = vector.broadcast %38 : vector<32x1xf32> to vector<32x128xf32>
    %40 = arith.subf %34, %39 : vector<32x128xf32>
    %41 = arith.mulf %40, %40 : vector<32x128xf32>
    %cst_15 = arith.constant dense<0.000000e+00> : vector<32xf32>
    %42 = vector.multi_reduction <add>, %41, %cst_15 [1] : vector<32x128xf32> to vector<32xf32>
    %43 = vector.shape_cast %42 : vector<32xf32> to vector<32x1xf32>
    %cst_16 = arith.constant 7.812500e-03 : f32
    %44 = vector.broadcast %cst_16 : f32 to vector<32x1xf32>
    %45 = arith.mulf %43, %44 : vector<32x1xf32>
    %cst_17 = arith.constant 9.99999974E-6 : f32
    %46 = vector.broadcast %cst_17 : f32 to vector<32x1xf32>
    %47 = arith.addf %45, %46 : vector<32x1xf32>
    %48 = math.rsqrt %47 : vector<32x1xf32>
    %49 = vector.broadcast %48 : vector<32x1xf32> to vector<32x128xf32>
    %50 = arith.mulf %40, %49 : vector<32x128xf32>
    %51 = vector.broadcast %18 : vector<1x128xf32> to vector<32x128xf32>
    %52 = arith.mulf %50, %51 : vector<32x128xf32>
    %53 = vector.broadcast %19 : vector<1x128xf32> to vector<32x128xf32>
    %54 = arith.addf %52, %53 : vector<32x128xf32>
    %c0_18 = arith.constant 0 : index
    %c0_19 = arith.constant 0 : index
    %55 = vector.load %arg7[%c0_18, %c0_19] : memref<32x128xf32, #tpu.memory_space<vmem>>, vector<32x128xf32>
    tpu.vector_store %arg7[%c0_18, %c0_19], %54 {strides = array<i32>} : memref<32x128xf32, #tpu.memory_space<vmem>>, vector<32x128xf32>,
    return
  }
  func.func @transform_0(%arg0: i32, %arg1: memref<6xi32, #tpu.memory_space<smem>>) -> (i32, i32) {
    %c0_i32 = arith.constant 0 : i32
    %c0_i32_0 = arith.constant 0 : i32
    return %arg0, %c0_i32 : i32, i32
  }
  func.func @transform_1(%arg0: i32, %arg1: memref<6xi32, #tpu.memory_space<smem>>) -> (i32, i32, i32) {
    %c0_i32 = arith.constant 0 : i32
    %c0_i32_0 = arith.constant 0 : i32
    %c0_i32_1 = arith.constant 0 : i32
    %c0_i32_2 = arith.constant 0 : i32
    return %c0_i32, %c0_i32_0, %c0_i32_1 : i32, i32, i32
  }
  func.func @transform_2(%arg0: i32, %arg1: memref<6xi32, #tpu.memory_space<smem>>) -> (i32, i32, i32) {
    %c0_i32 = arith.constant 0 : i32
    %c0_i32_0 = arith.constant 0 : i32
    %c0_i32_1 = arith.constant 0 : i32
    %c0_i32_2 = arith.constant 0 : i32
    return %c0_i32, %c0_i32_0, %c0_i32_1 : i32, i32, i32
  }
  func.func @transform_3(%arg0: i32, %arg1: memref<6xi32, #tpu.memory_space<smem>>) -> (i32, i32, i32) {
    %c0_i32 = arith.constant 0 : i32
    %c0_i32_0 = arith.constant 0 : i32
    %c0_i32_1 = arith.constant 0 : i32
    %c0_i32_2 = arith.constant 0 : i32
    return %c0_i32, %c0_i32_0, %c0_i32_1 : i32, i32, i32
  }
  func.func @transform_4(%arg0: i32, %arg1: memref<6xi32, #tpu.memory_space<smem>>) -> (i32, i32, i32) {
    %c0_i32 = arith.constant 0 : i32
    %c0_i32_0 = arith.constant 0 : i32
    %c0_i32_1 = arith.constant 0 : i32
    %c0_i32_2 = arith.constant 0 : i32
    return %c0_i32, %c0_i32_0, %c0_i32_1 : i32, i32, i32
  }
  func.func @transform_5(%arg0: i32, %arg1: memref<6xi32, #tpu.memory_space<smem>>) -> (i32, i32) {
    %c0_i32 = arith.constant 0 : i32
    %c0_i32_0 = arith.constant 0 : i32
    return %arg0, %c0_i32 : i32, i32
  }
}

</mosaic_0001>

<llo_original>
// kernel: _encode_segments.1
$region0: #{_encode_segments.1}
  #allocation0 [shape = 'u32[]', space=smem, size = 0x4, offset = 0x4, fixed_abs, tag = 'smem constant byte address 0x4 - core index']
  #allocation1 [shape = 'u32[72,128]{1,0:T(1,128)}', space=vmem, size = 0x9000, scoped, tag = 'internal scratch']
  #allocation2 [shape = 's32[1]{0}', space=sflag, size = 0x4, scoped, tag = 'scoped memory for _encode_segments.1']
  #allocation3 [shape = 'u8[512]{0}', space=smem, size = 0x200, scoped, tag = 'prefetched SMEM operand 0']
  %s0 = inlined_call_operand.vmem [shape: s32[6], index: 0, kind: input, shape index: {}]
  %s1 = inlined_call_operand.vmem [shape: bf16[192,16], index: 1, kind: input, shape index: {}]
  %s2 = inlined_call_operand.vmem [shape: bf16[6,16,128], index: 2, kind: input, shape index: {}]
  %s3 = inlined_call_operand.hbm [shape: bf16[6,128,128], index: 3, kind: input, shape index: {}]
  %s4 = inlined_call_operand.hbm [shape: bf16[6,128,128], index: 4, kind: input, shape index: {}]
  %s5 = inlined_call_operand.vmem [shape: f32[6,8,128], index: 5, kind: input, shape index: {}]
  %s6 = inlined_call_operand.vmem [shape: f32[192,128], index: 6, kind: output, shape index: {}]
  %s7 = sld [smem:[#allocation0]]
  $region61: #{_encode_segments.1} parent=0
    _
  %s9 = ssub.s32 1, %s7
  %s10 = scalar_select 0, %s9, %s7
  %s12 = sshll.u32 %s0, 4
  %s13 = int_to_ptr.vmem [resolvable:$true] %s12
  %15 = dma.vmem_to_smem %s13, 16, [#allocation3], [#allocation2]
  %17 = dma.done [#allocation2], 16
  %18 = sfence
  $region1: #{_encode_segments.1} parent=0
    #allocation4 [shape = 'u8[196608]{0}', space=vmem, size = 0x30000, scoped, tag = 'input window, operand 3, single buffered']
    #allocation5 [shape = 's32[2]{0}', space=sflag, size = 0x8, scoped, tag = 'scoped memory for _encode_segments.1']
    #allocation6 [shape = 'u8[196608]{0}', space=vmem, size = 0x30000, scoped, tag = 'input window, operand 4, single buffered']
    #allocation7 [shape = 's32[1]{0}', space=sflag, size = 0x4, scoped, tag = 'scoped memory for _encode_segments.1']
    %19 = vsyncpa [#allocation5], 0
    %20 = vsyncpa [#allocation7], 0
    loop: start=0, step=1, limit=8
    $region2: #{_encode_segments.1} parent=1 // loop_pre_header
      _
    $region3: #{_encode_segments.1} parent=1 // loop_header
      %s22 = sphi 0, %s26
      %p23 = scmp.ge.s32.totalorder %s22, 8
      %s32 = sphi 0, %s34
      %s35 = sphi 0, %s32
      %s36 = sphi 0, %s35
      %s52 = sphi 0, %s36
      %s56 = sphi 0, %s56
      %s58 = sphi 0, %s56
      %s59 = sphi 0, %s58
      %s73 = sphi 0, %s59
      %s77 = sphi 0, %s77
      %s79 = sphi 0, %s77
      %s80 = sphi 0, %s79
      %s94 = sphi 0, %s80
      %s98 = sphi 0, %s98
      %s100 = sphi 0, %s98
      %s101 = sphi 0, %s100
      %s115 = sphi 0, %s101
      %s119 = sphi 0, %s119
      %s121 = sphi 0, %s119
      %s122 = sphi 0, %s121
      %s136 = sphi 0, %s122
      %s142 = sphi 0, %s144
      %s145 = sphi 0, %s142
      %s146 = sphi 0, %s145
      %s162 = sphi 0, %s146
    $region4: #{_encode_segments.1} parent=1 // loop_header_branch
      %25 = sbr.rel (%p23) target = $region8
    $region5: #{_encode_segments.1} parent=1 // loop_body
      %s27 = ssub.s32 %s22, 1
      %s28 = ssub.s32 %s22, 2
      %s29 = sadd.s32 %s22, 1
      %s30 = ssub.s32 %s22, %s29
      %p31 = scmp.eq.s32.totalorder %s30, 0
      %s33 = sadd.s32 %s32, 1
      %s34 = scalar_select %p31, %s32, %s33
      %p37 = pneg %p31
      %p38 = scmp.eq.s32.totalorder %s22, 5
      %p39 = por %p37, %p38
      %p40 = scmp.ne.s32.totalorder %s32, %s35
      %p41 = scmp.eq.s32.totalorder %s22, 0
      %p42 = por %p40, %p41
      %p43 = scmp.ne.s32.totalorder %s32, %s35
      %p44 = scmp.eq.s32.totalorder %s27, 5
      %p45 = por %p43, %p44
      %p46 = scmp.ne.s32.totalorder %s35, %s36
      %p47 = scmp.eq.s32.totalorder %s27, 0
      %p48 = por %p46, %p47
      %p49 = scmp.ne.s32.totalorder %s35, %s36
      %p50 = scmp.eq.s32.totalorder %s28, 5
      %p51 = por %p49, %p50
      %p53 = scmp.ne.s32.totalorder %s36, %s52
      %p54 = scmp.eq.s32.totalorder %s28, 0
      %p55 = por %p53, %p54
      %s57 = sadd.s32 %s56, 1
      %p60 = scmp.eq.s32.totalorder %s22, 5
      %p61 = scmp.ne.s32.totalorder %s56, %s58
      %p62 = scmp.eq.s32.totalorder %s22, 0
      %p63 = por %p61, %p62
      %p64 = scmp.ne.s32.totalorder %s56, %s58
      %p65 = scmp.eq.s32.totalorder %s27, 5
      %p66 = por %p64, %p65
      %p67 = scmp.ne.s32.totalorder %s58, %s59
      %p68 = scmp.eq.s32.totalorder %s27, 0
      %p69 = por %p67, %p68
      %p70 = scmp.ne.s32.totalorder %s58, %s59
      %p71 = scmp.eq.s32.totalorder %s28, 5
      %p72 = por %p70, %p71
      %p74 = scmp.ne.s32.totalorder %s59, %s73
      %p75 = scmp.eq.s32.totalorder %s28, 0
      %p76 = por %p74, %p75
      %s78 = sadd.s32 %s77, 1
      %p81 = scmp.eq.s32.totalorder %s22, 5
      %p82 = scmp.ne.s32.totalorder %s77, %s79
      %p83 = scmp.eq.s32.totalorder %s22, 0
      %p84 = por %p82, %p83
      %p85 = scmp.ne.s32.totalorder %s77, %s79
      %p86 = scmp.eq.s32.totalorder %s27, 5
      %p87 = por %p85, %p86
      %p88 = scmp.ne.s32.totalorder %s79, %s80
      %p89 = scmp.eq.s32.totalorder %s27, 0
      %p90 = por %p88, %p89
      %p91 = scmp.ne.s32.totalorder %s79, %s80
      %p92 = scmp.eq.s32.totalorder %s28, 5
      %p93 = por %p91, %p92
      %p95 = scmp.ne.s32.totalorder %s80, %s94
      %p96 = scmp.eq.s32.totalorder %s28, 0
      %p97 = por %p95, %p96
      %s99 = sadd.s32 %s98, 1
      %p102 = scmp.eq.s32.totalorder %s22, 5
      %p103 = scmp.ne.s32.totalorder %s98, %s100
      %p104 = scmp.eq.s32.totalorder %s22, 0
      %p105 = por %p103, %p104
      %p106 = scmp.ne.s32.totalorder %s98, %s100
      %p107 = scmp.eq.s32.totalorder %s27, 5
      %p108 = por %p106, %p107
      %p109 = scmp.ne.s32.totalorder %s100, %s101
      %p110 = scmp.eq.s32.totalorder %s27, 0
      %p111 = por %p109, %p110
      %p112 = scmp.ne.s32.totalorder %s100, %s101
      %p113 = scmp.eq.s32.totalorder %s28, 5
      %p114 = por %p112, %p113
      %p116 = scmp.ne.s32.totalorder %s101, %s115
      %p117 = scmp.eq.s32.totalorder %s28, 0
      %p118 = por %p116, %p117
      %s120 = sadd.s32 %s119, 1
      %p123 = scmp.eq.s32.totalorder %s22, 5
      %p124 = scmp.ne.s32.totalorder %s119, %s121
      %p125 = scmp.eq.s32.totalorder %s22, 0
      %p126 = por %p124, %p125
      %p127 = scmp.ne.s32.totalorder %s119, %s121
      %p128 = scmp.eq.s32.totalorder %s27, 5
      %p129 = por %p127, %p128
      %p130 = scmp.ne.s32.totalorder %s121, %s122
      %p131 = scmp.eq.s32.totalorder %s27, 0
      %p132 = por %p130, %p131
      %p133 = scmp.ne.s32.totalorder %s121, %s122
      %p134 = scmp.eq.s32.totalorder %s28, 5
      %p135 = por %p133, %p134
      %p137 = scmp.ne.s32.totalorder %s122, %s136
      %p138 = scmp.eq.s32.totalorder %s28, 0
      %p139 = por %p137, %p138
      %s140 = ssub.s32 %s22, %s29
      %p141 = scmp.eq.s32.totalorder %s140, 0
      %s143 = sadd.s32 %s142, 1
      %s144 = scalar_select %p141, %s142, %s143
      %p147 = pneg %p141
      %p148 = scmp.eq.s32.totalorder %s22, 5
      %p149 = por %p147, %p148
      %p150 = scmp.ne.s32.totalorder %s142, %s145
      %p151 = scmp.eq.s32.totalorder %s22, 0
      %p152 = por %p150, %p151
      %p153 = scmp.ne.s32.totalorder %s142, %s145
      %p154 = scmp.eq.s32.totalorder %s27, 5
      %p155 = por %p153, %p154
      %p156 = scmp.ne.s32.totalorder %s145, %s146
      %p157 = scmp.eq.s32.totalorder %s27, 0
      %p158 = por %p156, %p157
      %p159 = scmp.ne.s32.totalorder %s145, %s146
      %p160 = scmp.eq.s32.totalorder %s28, 5
      %p161 = por %p159, %p160
      %p163 = scmp.ne.s32.totalorder %s146, %s162
      %p164 = scmp.eq.s32.totalorder %s28, 0
      %p165 = por %p163, %p164
      %p166 = scmp.le.s32.totalorder 1, %s22
      %p167 = scmp.lt.s32.totalorder %s22, 7
      %p168 = pnand %p166, %p167
      %p169 = pneg %p168
      // Predicated region
      $region9: #{_encode_segments.1} parent=5 // pred_check
        _
      $region10: #{_encode_segments.1} parent=5 // pred_check_branch
        %171 = sbr.rel (%p168) target = $region12
      $region11: #{_encode_segments.1} parent=5 // pred_region
        %s172 = ssub.s32 %s22, 1
        // Predicated region
        $region13: #{_encode_segments.1} parent=11 // pred_check
          %p173 = pneg %p69
        $region14: #{_encode_segments.1} parent=11 // pred_check_branch
          %175 = sbr.rel (%p173) target = $region16
        $region15: #{_encode_segments.1} parent=11 // pred_region
          _
        $region16: #{_encode_segments.1} parent=11 // pred_fallthru
          _
        // Predicated region
        $region17: #{_encode_segments.1} parent=11 // pred_check
          %p176 = pneg %p90
        $region18: #{_encode_segments.1} parent=11 // pred_check_branch
          %178 = sbr.rel (%p176) target = $region20
        $region19: #{_encode_segments.1} parent=11 // pred_region
          %180 = vsyncadd [#allocation5], 0
          %s181 = sshll.u32 %s3, 4
          %s182 = int_to_ptr.hbm [resolvable:$true] %s181
          %s183 = sshll.u32 [#allocation4], 4
          %s184 = int_to_ptr.vmem [resolvable:$true] %s183
          %189 = dma.hbm_to_vmem [thread:$0]  %s182, 6144, %s184, [#allocation5], 64, 64, 4
        $region20: #{_encode_segments.1} parent=11 // pred_fallthru
          _
        // Predicated region
        $region21: #{_encode_segments.1} parent=11 // pred_check
          %p190 = pneg %p111
        $region22: #{_encode_segments.1} parent=11 // pred_check_branch
          %192 = sbr.rel (%p190) target = $region24
        $region23: #{_encode_segments.1} parent=11 // pred_region
          %194 = vsyncadd [#allocation7], 0
          %s195 = sshll.u32 %s4, 4
          %s196 = int_to_ptr.hbm [resolvable:$true] %s195
          %s197 = sshll.u32 [#allocation6], 4
          %s198 = int_to_ptr.vmem [resolvable:$true] %s197
          %203 = dma.hbm_to_vmem [thread:$0]  %s196, 6144, %s198, [#allocation7], 64, 64, 4
        $region24: #{_encode_segments.1} parent=11 // pred_fallthru
          _
        // Predicated region
        $region25: #{_encode_segments.1} parent=11 // pred_check
          %p204 = pneg %p132
        $region26: #{_encode_segments.1} parent=11 // pred_check_branch
          %206 = sbr.rel (%p204) target = $region28
        $region27: #{_encode_segments.1} parent=11 // pred_region
          _
        $region28: #{_encode_segments.1} parent=11 // pred_fallthru
          _
      $region12: #{_encode_segments.1} parent=5 // pred_fallthru
        _
      %p207 = scmp.lt.s32.totalorder %s22, 6
      // Predicated region
      $region29: #{_encode_segments.1} parent=5 // pred_check
        %p208 = pneg %p207
      $region30: #{_encode_segments.1} parent=5 // pred_check_branch
        %210 = sbr.rel (%p208) target = $region32
      $region31: #{_encode_segments.1} parent=5 // pred_region
        // Predicated region
        $region33: #{_encode_segments.1} parent=31 // pred_check
          %p211 = pneg %p42
        $region34: #{_encode_segments.1} parent=31 // pred_check_branch
          %213 = sbr.rel (%p211) target = $region36
        $region35: #{_encode_segments.1} parent=31 // pred_region
          %s214 = smul.u32 4, %s22
          %p215 = scmp.lt.s32.totalorder %s214, 23
          %s216 = scalar_select %p215, %s214, 23
          %s217 = smul.addr %s216, 4
          %s218 = scalar_lea.vmem %s1, %s217
          %s219 = smul.u32 4, %s22
        $region36: #{_encode_segments.1} parent=31 // pred_fallthru
          _
      $region32: #{_encode_segments.1} parent=5 // pred_fallthru
        _
      %p220 = scmp.le.s32.totalorder 1, %s22
      %p221 = scmp.lt.s32.totalorder %s22, 7
      %p222 = pnand %p220, %p221
      %p223 = pneg %p222
      // Predicated region
      $region37: #{_encode_segments.1} parent=5 // pred_check
        _
      $region38: #{_encode_segments.1} parent=5 // pred_check_branch
        %225 = sbr.rel (%p222) target = $region40
      $region39: #{_encode_segments.1} parent=5 // pred_region
        %s226 = ssub.s32 %s22, 1
        // Predicated region
        $region41: #{_encode_segments.1} parent=39 // pred_check
          %p227 = pneg %p90
        $region42: #{_encode_segments.1} parent=39 // pred_check_branch
          %229 = sbr.rel (%p227) target = $region44
        $region43: #{_encode_segments.1} parent=39 // pred_region
          %231 = dma.done [#allocation5], 6144
        $region44: #{_encode_segments.1} parent=39 // pred_fallthru
          _
        // Predicated region
        $region45: #{_encode_segments.1} parent=39 // pred_check
          %p232 = pneg %p111
        $region46: #{_encode_segments.1} parent=39 // pred_check_branch
          %234 = sbr.rel (%p232) target = $region48
        $region47: #{_encode_segments.1} parent=39 // pred_region
          %236 = dma.done [#allocation7], 6144
        $region48: #{_encode_segments.1} parent=39 // pred_fallthru
          _
        %s237 = smul.u32 4, %s27
        %p238 = scmp.lt.s32.totalorder %s237, 23
        %s239 = scalar_select %p238, %s237, 23
        %s240 = smul.addr %s239, 4
        %s241 = scalar_lea.vmem %s1, %s240
        %p242 = pneg %p48
        %p243 = pneg %p45
        %p244 = pneg %p69
        %p245 = pneg %p66
        %p246 = pneg %p90
        %p247 = pneg %p87
        %p248 = pneg %p111
        %p249 = pneg %p108
        %p250 = pneg %p132
        %p251 = pneg %p129
        %p252 = pneg %p158
        %p253 = pneg %p155
        %s254 = smul.u32 4, %s27
        %p255 = scmp.lt.s32.totalorder %s254, 23
        %s256 = scalar_select %p255, %s254, 23
        %s257 = smul.addr %s256, 8
        %s258 = scalar_lea.vmem %s6, %s257
        %s259 = smul.u32 4, %s27
        %p260 = scmp.lt.s32.totalorder %s259, 23
        %s261 = scalar_select %p260, %s259, 23
        %s262 = smul.addr %s261, 4
        %s263 = scalar_lea.vmem %s1, %s262
        %s264 = smul.u32 4, %s27
        %s265 = smul.u32 4, %s27
        %p266 = scmp.lt.s32.totalorder %s265, 23
        %s267 = scalar_select %p266, %s265, 23
        %s268 = smul.addr %s267, 8
        %s269 = scalar_lea.vmem %s6, %s268
        %s270 = smul.u32 4, %s27
        %s272 = sld [smem:[#allocation3 + %s27]]
        %v273 = vld [vmem:[%s263] sm:$0xf]
        %v274 = vld [vmem:[%s263 + $0x4] sm:$0xf]
        %v275 = vld [vmem:[%s263 + $0x8] sm:$0xf]
        %v276 = vld [vmem:[%s263 + $0xc] sm:$0xf]
        %s277 = smul.u32 %s272, 2
        %s278 = smul.addr %s277, 4
        %s279 = scalar_lea.vmem %s2, %s278
        %v280 = vld [vmem:[%s279] sm:$0xf]
        %v281 = vld [vmem:[%s279 + $0x4] sm:$0xf]
        %s282 = smul.u32 %s272, 16
        %s283 = smul.addr %s282, 4
        %s284 = scalar_lea.vmem [#allocation4], %s283
        %v285 = vld [vmem:[%s284] sm:$0xf]
        %v286 = vld [vmem:[%s284 + $0x4] sm:$0xf]
        %v287 = vld [vmem:[%s284 + $0x8] sm:$0xf]
        %v288 = vld [vmem:[%s284 + $0xc] sm:$0xf]
        %v289 = vld [vmem:[%s284 + $0x10] sm:$0xf]
        %v290 = vld [vmem:[%s284 + $0x14] sm:$0xf]
        %v291 = vld [vmem:[%s284 + $0x18] sm:$0xf]
        %v292 = vld [vmem:[%s284 + $0x1c] sm:$0xf]
        %v293 = vld [vmem:[%s284 + $0x20] sm:$0xf]
        %v294 = vld [vmem:[%s284 + $0x24] sm:$0xf]
        %v295 = vld [vmem:[%s284 + $0x28] sm:$0xf]
        %v296 = vld [vmem:[%s284 + $0x2c] sm:$0xf]
        %v297 = vld [vmem:[%s284 + $0x30] sm:$0xf]
        %v298 = vld [vmem:[%s284 + $0x34] sm:$0xf]
        %v299 = vld [vmem:[%s284 + $0x38] sm:$0xf]
        %v300 = vld [vmem:[%s284 + $0x3c] sm:$0xf]
        %s301 = smul.addr %s282, 4
        %s302 = scalar_lea.vmem [#allocation6], %s301
        %v303 = vld [vmem:[%s302] sm:$0xf]
        %v304 = vld [vmem:[%s302 + $0x4] sm:$0xf]
        %v305 = vld [vmem:[%s302 + $0x8] sm:$0xf]
        %v306 = vld [vmem:[%s302 + $0xc] sm:$0xf]
        %v307 = vld [vmem:[%s302 + $0x10] sm:$0xf]
        %v308 = vld [vmem:[%s302 + $0x14] sm:$0xf]
        %v309 = vld [vmem:[%s302 + $0x18] sm:$0xf]
        %v310 = vld [vmem:[%s302 + $0x1c] sm:$0xf]
        %v311 = vld [vmem:[%s302 + $0x20] sm:$0xf]
        %v312 = vld [vmem:[%s302 + $0x24] sm:$0xf]
        %v313 = vld [vmem:[%s302 + $0x28] sm:$0xf]
        %v314 = vld [vmem:[%s302 + $0x2c] sm:$0xf]
        %v315 = vld [vmem:[%s302 + $0x30] sm:$0xf]
        %v316 = vld [vmem:[%s302 + $0x34] sm:$0xf]
        %v317 = vld [vmem:[%s302 + $0x38] sm:$0xf]
        %v318 = vld [vmem:[%s302 + $0x3c] sm:$0xf]
        %s319 = smul.u32 %s272, 8
        %s320 = scalar_lea.vmem %s5, %s319
        %v321 = vld [vmem:[%s320] sm:$0xff]
        %v322 = vperm.slane %v321, 0
        %v327 = vunpack.c.l.b16 %v273
        %v328 = vunpack.c.l.b16 %v274
        %v329 = vunpack.c.l.b16 %v275
        %v330 = vunpack.c.l.b16 %v276
        %v331 = vpack.c.b16 %v328, %v327
        %v332 = vpack.c.b16 %v330, %v329
        %v335 = vunpack.c.l.b16 %v280
        %v336 = vunpack.c.l.b16 %v281
        %v337 = vpack.c.b16 %v336, %v335
        %vm339 = vcmask 130048
        %v341 = vsel %vm339, %v331, 0
        %v344 = vsel %vm339, %v332, 0
        %346 = vmatpush.bf16.msra.mxu0 0
        %347 = vmatpush.bf16.msra.mxu0 0
        %348 = vmatpush.bf16.msra.mxu0 0
        %349 = vmatpush.bf16.msra.mxu0 0
        %350 = vmatpush.bf16.msra.mxu0 0
        %351 = vmatpush.bf16.msra.mxu0 0
        %352 = vmatpush.bf16.msra.mxu0 0
        %353 = vmatpush.bf16.msra.mxu0 %v337
        %354 = vmatmul.bf16.gmra.mxu0 %v341
        %v355 = vpop.f32.mrf.mxu0
        %v356 = vadd.f32 %v322, %v355
        %v357 = vpop.f32.mrf.mxu0
        %v358 = vadd.f32 %v322, %v357
        %359 = vmatmul.bf16.gmra.mxu0 %v344
        %v360 = vpop.f32.mrf.mxu0
        %v361 = vadd.f32 %v322, %v360
        %v362 = vpop.f32.mrf.mxu0
        %v363 = vadd.f32 %v322, %v362
        %364 = vdwg.mxu0
        %v365 = vmax.f32 %v356, 0.0
        %v366 = vmax.f32 %v358, 0.0
        %v367 = vmax.f32 %v361, 0.0
        %v368 = vmax.f32 %v363, 0.0
        %v369 = vpack.c.bf16 %v366, %v365
        %v370 = vpack.c.bf16 %v368, %v367
        %v371 = vperm.slane %v321, 1
        %v388 = vunpack.c.l.b16 %v285
        %v389 = vunpack.c.l.b16 %v286
        %v390 = vunpack.c.l.b16 %v287
        %v391 = vunpack.c.l.b16 %v288
        %v392 = vunpack.c.l.b16 %v289
        %v393 = vunpack.c.l.b16 %v290
        %v394 = vunpack.c.l.b16 %v291
        %v395 = vunpack.c.l.b16 %v292
        %v396 = vunpack.c.l.b16 %v293
        %v397 = vunpack.c.l.b16 %v294
        %v398 = vunpack.c.l.b16 %v295
        %v399 = vunpack.c.l.b16 %v296
        %v400 = vunpack.c.l.b16 %v297
        %v401 = vunpack.c.l.b16 %v298
        %v402 = vunpack.c.l.b16 %v299
        %v403 = vunpack.c.l.b16 %v300
        %v404 = vpack.c.b16 %v389, %v388
        %v405 = vpack.c.b16 %v391, %v390
        %v406 = vpack.c.b16 %v393, %v392
        %v407 = vpack.c.b16 %v395, %v394
        %v408 = vpack.c.b16 %v397, %v396
        %v409 = vpack.c.b16 %v399, %v398
        %v410 = vpack.c.b16 %v401, %v400
        %v411 = vpack.c.b16 %v403, %v402
        %420 = vmatpush.bf16.msra.mxu0 %v411
        %421 = vmatpush.bf16.msra.mxu0 %v410
        %422 = vmatpush.bf16.msra.mxu0 %v409
        %423 = vmatpush.bf16.msra.mxu0 %v408
        %424 = vmatpush.bf16.msra.mxu0 %v407
        %425 = vmatpush.bf16.msra.mxu0 %v406
        %426 = vmatpush.bf16.msra.mxu0 %v405
        %427 = vmatpush.bf16.msra.mxu0 %v404
        %428 = vmatmul.bf16.gmra.mxu0 %v369
        %v429 = vpop.f32.mrf.mxu0
        %v430 = vadd.f32 %v371, %v429
        %v431 = vpop.f32.mrf.mxu0
        %v432 = vadd.f32 %v371, %v431
        %433 = vmatmul.bf16.gmra.mxu0 %v370
        %v434 = vpop.f32.mrf.mxu0
        %v435 = vadd.f32 %v371, %v434
        %v436 = vpop.f32.mrf.mxu0
        %v437 = vadd.f32 %v371, %v436
        %438 = vdwg.mxu0
        %v439 = vmax.f32 %v430, 0.0
        %v440 = vmax.f32 %v432, 0.0
        %v441 = vmax.f32 %v435, 0.0
        %v442 = vmax.f32 %v437, 0.0
        %v443 = vpack.c.bf16 %v440, %v439
        %v444 = vpack.c.bf16 %v442, %v441
        %v445 = vperm.slane %v321, 2
        %v462 = vunpack.c.l.b16 %v303
        %v463 = vunpack.c.l.b16 %v304
        %v464 = vunpack.c.l.b16 %v305
        %v465 = vunpack.c.l.b16 %v306
        %v466 = vunpack.c.l.b16 %v307
        %v467 = vunpack.c.l.b16 %v308
        %v468 = vunpack.c.l.b16 %v309
        %v469 = vunpack.c.l.b16 %v310
        %v470 = vunpack.c.l.b16 %v311
        %v471 = vunpack.c.l.b16 %v312
        %v472 = vunpack.c.l.b16 %v313
        %v473 = vunpack.c.l.b16 %v314
        %v474 = vunpack.c.l.b16 %v315
        %v475 = vunpack.c.l.b16 %v316
        %v476 = vunpack.c.l.b16 %v317
        %v477 = vunpack.c.l.b16 %v318
        %v478 = vpack.c.b16 %v463, %v462
        %v479 = vpack.c.b16 %v465, %v464
        %v480 = vpack.c.b16 %v467, %v466
        %v481 = vpack.c.b16 %v469, %v468
        %v482 = vpack.c.b16 %v471, %v470
        %v483 = vpack.c.b16 %v473, %v472
        %v484 = vpack.c.b16 %v475, %v474
        %v485 = vpack.c.b16 %v477, %v476
        %494 = vmatpush.bf16.msra.mxu0 %v485
        %495 = vmatpush.bf16.msra.mxu0 %v484
        %496 = vmatpush.bf16.msra.mxu0 %v483
        %497 = vmatpush.bf16.msra.mxu0 %v482
        %498 = vmatpush.bf16.msra.mxu0 %v481
        %499 = vmatpush.bf16.msra.mxu0 %v480
        %500 = vmatpush.bf16.msra.mxu0 %v479
        %501 = vmatpush.bf16.msra.mxu0 %v478
        %502 = vmatmul.bf16.gmra.mxu0 %v443
        %v503 = vpop.f32.mrf.mxu0
        %v504 = vadd.f32 %v445, %v503
        %v505 = vpop.f32.mrf.mxu0
        %v506 = vadd.f32 %v445, %v505
        %507 = vmatmul.bf16.gmra.mxu0 %v444
        %v508 = vpop.f32.mrf.mxu0
        %v509 = vadd.f32 %v445, %v508
        %v510 = vpop.f32.mrf.mxu0
        %v511 = vadd.f32 %v445, %v510
        %512 = vdwg.mxu0
        %513 = vadd.xlane.f32.xlu0 %v504
        %v514 = vpop.xlane.xlu0 %513
        %515 = vadd.xlane.f32.xlu0 %v506
        %v516 = vpop.xlane.xlu0 %515
        %517 = vadd.xlane.f32.xlu0 %v509
        %v518 = vpop.xlane.xlu0 %517
        %519 = vadd.xlane.f32.xlu0 %v511
        %v520 = vpop.xlane.xlu0 %519
        %v521 = vmul.f32 %v514, 0.0078125
        %v522 = vmul.f32 %v516, 0.0078125
        %v523 = vmul.f32 %v518, 0.0078125
        %v524 = vmul.f32 %v520, 0.0078125
        %v525 = vsub.f32 %v504, %v521
        %v526 = vsub.f32 %v506, %v522
        %v527 = vsub.f32 %v509, %v523
        %v528 = vsub.f32 %v511, %v524
        %v529 = vmul.f32 %v525, %v525
        %v530 = vmul.f32 %v526, %v526
        %v531 = vmul.f32 %v527, %v527
        %v532 = vmul.f32 %v528, %v528
        %533 = vadd.xlane.f32.xlu0 %v529
        %v534 = vpop.xlane.xlu0 %533
        %535 = vadd.xlane.f32.xlu0 %v530
        %v536 = vpop.xlane.xlu0 %535
        %537 = vadd.xlane.f32.xlu0 %v531
        %v538 = vpop.xlane.xlu0 %537
        %539 = vadd.xlane.f32.xlu0 %v532
        %v540 = vpop.xlane.xlu0 %539
        %v541 = vmul.f32 %v534, 0.0078125
        %v542 = vmul.f32 %v536, 0.0078125
        %v543 = vmul.f32 %v538, 0.0078125
        %v544 = vmul.f32 %v540, 0.0078125
        %v545 = vadd.f32 %v541, 1e-05
        %v546 = vadd.f32 %v542, 1e-05
        %v547 = vadd.f32 %v543, 1e-05
        %v548 = vadd.f32 %v544, 1e-05
        %v549 = vrsqrt.pop %v545
        %v550 = vmul.f32 %v549, %v545
        %v551 = vmul.f32 %v550, %v549
        %v552 = vmul.f32 0.5, %v551
        %v553 = vsub.f32 1.5, %v552
        %v554 = vmul.f32 %v549, %v553
        %vm555 = vweird.f32 %v545
        %vm556 = vweird.f32 %v549
        %vm557 = vmor %vm555, %vm556
        %v558 = vsel %vm557, %v549, %v554
        %v559 = vrsqrt.pop %v546
        %v560 = vmul.f32 %v559, %v546
        %v561 = vmul.f32 %v560, %v559
        %v562 = vmul.f32 0.5, %v561
        %v563 = vsub.f32 1.5, %v562
        %v564 = vmul.f32 %v559, %v563
        %vm565 = vweird.f32 %v546
        %vm566 = vweird.f32 %v559
        %vm567 = vmor %vm565, %vm566
        %v568 = vsel %vm567, %v559, %v564
        %v569 = vrsqrt.pop %v547
        %v570 = vmul.f32 %v569, %v547
        %v571 = vmul.f32 %v570, %v569
        %v572 = vmul.f32 0.5, %v571
        %v573 = vsub.f32 1.5, %v572
        %v574 = vmul.f32 %v569, %v573
        %vm575 = vweird.f32 %v547
        %vm576 = vweird.f32 %v569
        %vm577 = vmor %vm575, %vm576
        %v578 = vsel %vm577, %v569, %v574
        %v579 = vrsqrt.pop %v548
        %v580 = vmul.f32 %v579, %v548
        %v581 = vmul.f32 %v580, %v579
        %v582 = vmul.f32 0.5, %v581
        %v583 = vsub.f32 1.5, %v582
        %v584 = vmul.f32 %v579, %v583
        %vm585 = vweird.f32 %v548
        %vm586 = vweird.f32 %v579
        %vm587 = vmor %vm585, %vm586
        %v588 = vsel %vm587, %v579, %v584
        %v589 = vmul.f32 %v525, %v558
        %v590 = vmul.f32 %v526, %v568
        %v591 = vmul.f32 %v527, %v578
        %v592 = vmul.f32 %v528, %v588
        %v593 = vperm.slane %v321, 3
        %v594 = vmul.f32 %v589, %v593
        %v595 = vmul.f32 %v590, %v593
        %v596 = vmul.f32 %v591, %v593
        %v597 = vmul.f32 %v592, %v593
        %v598 = vperm.slane %v321, 4
        %v599 = vadd.f32 %v594, %v598
        %v600 = vadd.f32 %v595, %v598
        %v601 = vadd.f32 %v596, %v598
        %v602 = vadd.f32 %v597, %v598
        %603 = vst [vmem:[%s269] sm:$0xff] %v599
        %604 = vst [vmem:[%s269 + $0x8] sm:$0xff] %v600
        %605 = vst [vmem:[%s269 + $0x10] sm:$0xff] %v601
        %606 = vst [vmem:[%s269 + $0x18] sm:$0xff] %v602
        %s607 = smul.u32 4, %s27
        %p608 = scmp.lt.s32.totalorder %s607, 23
        %s609 = scalar_select %p608, %s607, 23
        %s610 = smul.addr %s609, 8
        %s611 = scalar_lea.vmem %s6, %s610
        // Predicated region
        $region49: #{_encode_segments.1} parent=39 // pred_check
          %p612 = pneg %p155
        $region50: #{_encode_segments.1} parent=39 // pred_check_branch
          %614 = sbr.rel (%p612) target = $region52
        $region51: #{_encode_segments.1} parent=39 // pred_region
          %s615 = smul.u32 4, %s27
        $region52: #{_encode_segments.1} parent=39 // pred_fallthru
          _
      $region40: #{_encode_segments.1} parent=5 // pred_fallthru
        _
      %p616 = scmp.le.s32.totalorder 2, %s22
      // Predicated region
      $region53: #{_encode_segments.1} parent=5 // pred_check
        %p617 = pneg %p616
      $region54: #{_encode_segments.1} parent=5 // pred_check_branch
        %619 = sbr.rel (%p617) target = $region56
      $region55: #{_encode_segments.1} parent=5 // pred_region
        %s620 = ssub.s32 %s22, 2
        // Predicated region
        $region57: #{_encode_segments.1} parent=55 // pred_check
          %p621 = pneg %p161
        $region58: #{_encode_segments.1} parent=55 // pred_check_branch
          %623 = sbr.rel (%p621) target = $region60
        $region59: #{_encode_segments.1} parent=55 // pred_region
          %s624 = smul.u32 4, %s28
          %p625 = scmp.lt.s32.totalorder %s624, 23
          %s626 = scalar_select %p625, %s624, 23
          %s627 = smul.addr %s626, 8
          %s628 = scalar_lea.vmem %s6, %s627
        $region60: #{_encode_segments.1} parent=55 // pred_fallthru
          _
      $region56: #{_encode_segments.1} parent=5 // pred_fallthru
        _
    $region6: #{_encode_segments.1} parent=1 // loop_footer
      %s26 = sadd.s32 1, %s22
    $region7: #{_encode_segments.1} parent=1 // loop_footer_branch
      %21 = sbr.rel target = $region3
    $region8: #{_encode_segments.1} parent=1 // loop_exit
      _
    %629 = vsyncpa [#allocation5], 1
    %s630 = scalar_lea.sflag [#allocation5], 1
    %631 = vsyncpa %s630, 1
    %632 = vsyncpa [#allocation7], 1

</llo_original>
